<compile_context>
chip_gen: v5e
topology: v5e:2x2
jax: 0.10.0
libtpu: 0.0.40
codegen_flags: <defaults>
</compile_context>

<pallas_src>
import functools
import numpy as np

import jax
import jax.numpy as jnp
from jax.experimental import pallas as pl
from jax.experimental.pallas import tpu as pltpu

_BN_EPS = 1e-5


def _round_up(x, m):
    return ((x + m - 1) // m) * m


@functools.lru_cache(maxsize=None)
def _vmem_capacity_bytes():
    try:
        return int(pltpu.get_tpu_info().vmem_capacity_bytes)
    except Exception:
        return 64 * 1024 * 1024  # conservative fallback (v7x per-TensorCore VMEM)


# ----------------------------------------------------------------------------
# Fused multi-branch matmul + bias + ReLU kernel (BN pre-folded into w / b)
# ----------------------------------------------------------------------------
def _adapter_kernel(wid_ref, x_ref, w_ref, b_ref, o_ref):
    # x: (TM, K_max) bf16, w: (K_max, C_max) bf16, b: (1, C_max) f32
    acc = jnp.dot(x_ref[...], w_ref[...], preferred_element_type=jnp.float32)
    acc = jnp.maximum(acc + b_ref[...], 0.0)
    o_ref[...] = acc.astype(o_ref.dtype)  # bf16 store: halves output HBM bytes


def fused_adapter_matmul(x_cat, w_stack, b_stack, wid, tm):
    """relu(x @ w[branch] + b[branch]) for every TM-row tile of the concatenated input."""
    rows, k_max = x_cat.shape
    nb, k2, c_max = w_stack.shape
    assert k2 == k_max and rows % tm == 0
    n_blocks = rows // tm
    assert wid.shape == (n_blocks,)

    # Double-buffered per-step footprint (x / w / b in, out tile) + generous headroom,
    # capped at 75% of physical per-core VMEM (matters on v7x's 64 MiB).
    tile_bytes = tm * k_max * 2 + k_max * c_max * 2 + c_max * 4 + tm * c_max * 2
    vmem_limit = int(min(max(4 * tile_bytes + (8 << 20), 32 << 20),
                         int(_vmem_capacity_bytes() * 0.75)))

    cost = pl.CostEstimate(
        flops=2 * rows * k_max * c_max,
        transcendentals=0,
        bytes_accessed=int(x_cat.size * 2 + w_stack.size * 2 + b_stack.size * 4
                           + rows * c_max * 2),
    )

    return pl.pallas_call(
        _adapter_kernel,
        out_shape=jax.ShapeDtypeStruct((rows, c_max), jnp.bfloat16),
        grid_spec=pltpu.PrefetchScalarGridSpec(
            num_scalar_prefetch=1,
            grid=(n_blocks,),
            in_specs=[
                pl.BlockSpec((tm, k_max), lambda i, bids: (i, 0)),
                pl.BlockSpec((None, k_max, c_max), lambda i, bids: (bids[i], 0, 0)),
                pl.BlockSpec((None, 1, c_max), lambda i, bids: (bids[i], 0, 0)),
            ],
            out_specs=pl.BlockSpec((tm, c_max), lambda i, bids: (i, 0)),
        ),
        compiler_params=pltpu.CompilerParams(
            dimension_semantics=("parallel",),  # independent M tiles -> shards across v7x TCs
            vmem_limit_bytes=vmem_limit,
        ),
        cost_estimate=cost,
    )(wid, x_cat, w_stack, b_stack)


# ----------------------------------------------------------------------------
# BN folding (eval-mode running stats) + stacking into fused operands
# ----------------------------------------------------------------------------
def build_adapter_params(raw_params, eps=_BN_EPS):
    folded = []
    for p in raw_params:
        cout, cin = p["w"].shape[0], p["w"].shape[1]
        scale = p["gamma"] / jnp.sqrt(p["var"] + eps)            # (Cout,)
        w_mat = (p["w"][:, :, 0, 0] * scale[:, None]).T          # (Cin, Cout)
        bias = p["beta"] - p["mean"] * scale                     # (Cout,)
        folded.append((w_mat, bias, cin, cout))

    k_max = _round_up(max(f[2] for f in folded), 128)  # MXU-friendly contraction width
    c_max = max(f[3] for f in folded)                  # shared lane width == full dim (no pad-to-128)

    w_list, b_list, couts = [], [], []
    for (w_mat, bias, cin, cout) in folded:
        w_list.append(jnp.pad(w_mat, ((0, k_max - cin), (0, c_max - cout))))
        b_list.append(jnp.pad(bias, (0, c_max - cout)).reshape(1, c_max))
        couts.append(cout)

    return {
        "w": jnp.stack(w_list).astype(jnp.bfloat16),   # (nb, K_max, C_max)
        "b": jnp.stack(b_list).astype(jnp.float32),    # (nb, 1, C_max)
        "k_max": int(k_max),
        "c_max": int(c_max),
        "couts": tuple(couts),
    }


# ----------------------------------------------------------------------------
# AdapterConv forward: list of NCHW inputs -> list of NCHW outputs (one launch)
# ----------------------------------------------------------------------------
def adapter_conv_forward(xs, params, *, tm=128, out_dtype=jnp.float32):
    k_max, c_max, couts = params["k_max"], params["c_max"], params["couts"]
    assert len(xs) == len(couts)

    # Keep several M tiles live (>= 2 parallel grid steps for v7x) without over-padding
    # tiny branches; TM must stay a multiple of 8 for the (8,128) block constraint.
    max_m = max(x.shape[0] * x.shape[2] * x.shape[3] for x in xs)
    tm = min(tm, _round_up(max_m, 8))

    # NCHW -> (M, Cin) bf16, pad K to k_max, pad rows to the tile, concatenate along M.
    # TODO(synk): keep activations NHWC end-to-end upstream to drop this transpose pass
    # entirely (XLA fuses transpose+reshape+cast+pad into one copy here).
    mats, metas, wid_list = [], [], []
    off = 0
    for branch, x in enumerate(xs):
        n, c, h, w = x.shape
        m = n * h * w
        x2 = jnp.transpose(x, (0, 2, 3, 1)).reshape(m, c).astype(jnp.bfloat16)
        m_pad = _round_up(m, tm)
        x2 = jnp.pad(x2, ((0, m_pad - m), (0, k_max - c)))
        mats.append(x2)
        metas.append((off, n, h, w, m))
        wid_list.extend([branch] * (m_pad // tm))
        off += m_pad
    x_cat = jnp.concatenate(mats, axis=0)
    wid = jnp.asarray(np.asarray(wid_list, dtype=np.int32))

    y_cat = fused_adapter_matmul(x_cat, params["w"], params["b"], wid, tm)  # (rows, C_max) bf16

    # Per-branch slice (drops padded rows/lanes) + reshape/transpose on bf16, then one cast.
    outs = []
    for (row_off, n, h, w, m), cout in zip(metas, couts):
        y = y_cat[row_off:row_off + m, :cout].reshape(n, h, w, cout)
        outs.append(jnp.transpose(y, (0, 3, 1, 2)).astype(out_dtype))  # NCHW, like the module
    return outs


# ----------------------------------------------------------------------------
# Deterministic synthetic parameters + pure-JAX f32 reference
# ----------------------------------------------------------------------------
def init_adapter_params(key, in_channels, out_channels):
    raw = []
    for k, (cin, cout) in enumerate(zip(in_channels, out_channels)):
        kw, kg, kb, km, kv = jax.random.split(jax.random.fold_in(key, k), 5)
        w = jax.random.normal(kw, (cout, cin, 1, 1), jnp.float32) / np.sqrt(cin)
        gamma = 1.0 + 0.1 * jax.random.normal(kg, (cout,), jnp.float32)
        beta = 0.1 * jax.random.normal(kb, (cout,), jnp.float32)
        mean = 0.1 * jax.random.normal(km, (cout,), jnp.float32)
        var = 1.0 + 0.1 * jnp.abs(jax.random.normal(kv, (cout,), jnp.float32))
        raw.append({"w": w, "gamma": gamma, "beta": beta, "mean": mean, "var": var})
    return raw, build_adapter_params(raw)


def reference_forward(xs, raw_params):
    outs = []
    for x, p in zip(xs, raw_params):
        scale = p["gamma"] / jnp.sqrt(p["var"] + _BN_EPS)
        w = p["w"][:, :, 0, 0] * scale[:, None]                  # (Cout, Cin)
        b = p["beta"] - p["mean"] * scale
        y = jnp.einsum("nchw,oc->nohw", x, w) + b[None, :, None, None]
        outs.append(jnp.maximum(y, 0.0))
    return outs


# ----------------------------------------------------------------------------
if __name__ == "__main__":
    key = jax.random.PRNGKey(0)
    k_par, k_in = jax.random.split(key)

    # Small FPN-style pyramid (strides 4/8/16/32), consistent with AdapterConv usage.
    N = 2
    in_channels = [32, 64, 128, 256]
    out_channels = [16, 32, 64, 128]
    spatial = [(16, 16), (8, 8), (4, 4), (2, 2)]

    xs = []
    for k, (cin, (h, w)) in enumerate(zip(in_channels, spatial)):
        xs.append(jax.random.normal(jax.random.fold_in(k_in, k),
                                    (N, cin, h, w), jnp.float32))

    raw, prepared = init_adapter_params(k_par, in_channels, out_channels)

    fwd = jax.jit(lambda *a: adapter_conv_forward(list(a), prepared))
    outs = jax.block_until_ready(fwd(*xs))

    refs = reference_forward(xs, raw)
    for k, (o, r, cout, (h, w)) in enumerate(zip(outs, refs, out_channels, spatial)):
        assert o.shape == (N, cout, h, w), (k, o.shape)
        assert bool(jnp.isfinite(o).all()), k
        err = float(jnp.max(jnp.abs(o - r)))
        assert err < 0.15, (k, err)  # bf16 MXU inputs + bf16 store vs f32 reference

    print("KERNEL_OK")
</pallas_src>

<mosaic_0001>
module attributes {stable_mosaic.version = 11 : i64} {
  func.func @_adapter_kernel(%arg0: i32, %arg1: memref<7xi32, #tpu.memory_space<smem>>, %arg2: memref<128x256xbf16, #tpu.memory_space<vmem>>, %arg3: memref<1x256x128xbf16, #tpu.memory_space<vmem>>, %arg4: memref<1x1x128xf32, #tpu.memory_space<vmem>>, %arg5: memref<128x128xbf16, #tpu.memory_space<vmem>>) attributes {dimension_semantics = [#tpu.dimension_semantics<parallel>], iteration_bounds = array<i64: 7>, scalar_prefetch = 1 : i64, scratch_operands = 0 : i64, tpu.core_type = #tpu.core_type<tc>, window_params = [{transform_indices = @transform_0, window_bounds = array<i64: 128, 256>}, {transform_indices = @transform_1, window_bounds = array<i64: 1, 256, 128>}, {transform_indices = @transform_2, window_bounds = array<i64: 1, 1, 128>}, {transform_indices = @transform_3, window_bounds = array<i64: 128, 128>}]} {
    %c0 = arith.constant 0 : index
    %c0_0 = arith.constant 0 : index
    %0 = vector.load %arg2[%c0, %c0_0] : memref<128x256xbf16, #tpu.memory_space<vmem>>, vector<128x256xbf16>
    %c0_1 = arith.constant 0 : index
    %c0_2 = arith.constant 0 : index
    %c0_3 = arith.constant 0 : index
    %1 = vector.load %arg3[%c0_1, %c0_2, %c0_3] : memref<1x256x128xbf16, #tpu.memory_space<vmem>>, vector<1x256x128xbf16>
    %2 = vector.shape_cast %1 : vector<1x256x128xbf16> to vector<256x128xbf16>
    %cst = arith.constant dense<0.000000e+00> : vector<128x128xf32>
    %3 = tpu.matmul %0, %2, %cst {dimension_numbers = #tpu.dot_dimension_numbers<[1], [0], [0], [1], [0, 0, 1, 1], [], []>} : vector<128x256xbf16>, vector<256x128xbf16>, vector<128x128xf32> -> vector<128x128xf32>
    %c0_4 = arith.constant 0 : index
    %c0_5 = arith.constant 0 : index
    %c0_6 = arith.constant 0 : index
    %4 = vector.load %arg4[%c0_4, %c0_5, %c0_6] : memref<1x1x128xf32, #tpu.memory_space<vmem>>, vector<1x1x128xf32>
    %5 = vector.shape_cast %4 : vector<1x1x128xf32> to vector<1x128xf32>
    %6 = vector.broadcast %5 : vector<1x128xf32> to vector<128x128xf32>
    %7 = arith.addf %3, %6 : vector<128x128xf32>
    %cst_7 = arith.constant 0.000000e+00 : f32
    %8 = vector.broadcast %cst_7 : f32 to vector<128x128xf32>
    %9 = arith.maximumf %7, %8 : vector<128x128xf32>
    %10 = arith.truncf %9 : vector<128x128xf32> to vector<128x128xbf16>
    %c0_8 = arith.constant 0 : index
    %c0_9 = arith.constant 0 : index
    %11 = vector.load %arg5[%c0_8, %c0_9] : memref<128x128xbf16, #tpu.memory_space<vmem>>, vector<128x128xbf16>
    tpu.vector_store %arg5[%c0_8, %c0_9], %10 {strides = array<i32>} : memref<128x128xbf16, #tpu.memory_space<vmem>>, vector<128x128xbf16>,
    return
  }
  func.func @transform_0(%arg0: i32, %arg1: memref<7xi32, #tpu.memory_space<smem>>) -> (i32, i32) {
    %c0_i32 = arith.constant 0 : i32
    %c0_i32_0 = arith.constant 0 : i32
    return %arg0, %c0_i32 : i32, i32
  }
  func.func @transform_1(%arg0: i32, %arg1: memref<7xi32, #tpu.memory_space<smem>>) -> (i32, i32, i32) {
    %0 = arith.index_cast %arg0 : i32 to index
    %1 = memref.load %arg1[%0] : memref<7xi32, #tpu.memory_space<smem>>
    %c0_i32 = arith.constant 0 : i32
    %c0_i32_0 = arith.constant 0 : i32
    %c0_i32_1 = arith.constant 0 : i32
    return %1, %c0_i32, %c0_i32_0 : i32, i32, i32
  }
  func.func @transform_2(%arg0: i32, %arg1: memref<7xi32, #tpu.memory_space<smem>>) -> (i32, i32, i32) {
    %0 = arith.index_cast %arg0 : i32 to index
    %1 = memref.load %arg1[%0] : memref<7xi32, #tpu.memory_space<smem>>
    %c0_i32 = arith.constant 0 : i32
    %c0_i32_0 = arith.constant 0 : i32
    %c0_i32_1 = arith.constant 0 : i32
    return %1, %c0_i32, %c0_i32_0 : i32, i32, i32
  }
  func.func @transform_3(%arg0: i32, %arg1: memref<7xi32, #tpu.memory_space<smem>>) -> (i32, i32) {
    %c0_i32 = arith.constant 0 : i32
    %c0_i32_0 = arith.constant 0 : i32
    return %arg0, %c0_i32 : i32, i32
  }
}

</mosaic_0001>

<llo_original>
// kernel: _lambda_.1
$region0: #{_lambda_.1}
  #allocation0 [shape = 'u32[]', space=smem, size = 0x4, offset = 0x4, fixed_abs, tag = 'smem constant byte address 0x4 - core index']
  #allocation1 [shape = 'u32[72,128]{1,0:T(1,128)}', space=vmem, size = 0x9000, scoped, tag = 'internal scratch']
  #allocation2 [shape = 's32[1]{0}', space=sflag, size = 0x4, scoped, tag = 'scoped memory for _lambda_.1']
  #allocation3 [shape = 'u8[512]{0}', space=smem, size = 0x200, scoped, tag = 'prefetched SMEM operand 0']
  %s0 = inlined_call_operand.vmem [shape: s32[7], index: 0, kind: input, shape index: {}]
  %s1 = inlined_call_operand.vmem [shape: bf16[896,256], index: 1, kind: input, shape index: {}]
  %s2 = inlined_call_operand.vmem [shape: bf16[4,256,128], index: 2, kind: input, shape index: {}]
  %s3 = inlined_call_operand.vmem [shape: f32[4,1,128], index: 3, kind: input, shape index: {}]
  %s4 = inlined_call_operand.vmem [shape: bf16[896,128], index: 4, kind: output, shape index: {}]
  %s5 = sld [smem:[#allocation0]]
  $region45: #{_lambda_.1} parent=0
    _
  %s7 = ssub.s32 1, %s5
  %s8 = scalar_select 0, %s7, %s5
  %s10 = sshll.u32 %s0, 4
  %s11 = int_to_ptr.vmem [resolvable:$true] %s10
  %13 = dma.vmem_to_smem %s11, 16, [#allocation3], [#allocation2]
  %15 = dma.done [#allocation2], 16
  %16 = sfence
  loop: start=0, step=1, limit=9
  $region2: #{_lambda_.1} parent=0 // loop_pre_header
    _
  $region3: #{_lambda_.1} parent=0 // loop_header
    %s18 = sphi 0, %s22
    %p19 = scmp.ge.s32.totalorder %s18, 9
    %s28 = sphi 0, %s30
    %s31 = sphi 0, %s28
    %s32 = sphi 0, %s31
    %s48 = sphi 0, %s32
    %s56 = sphi 0, %s58
    %s59 = sphi 0, %s56
    %s60 = sphi 0, %s59
    %s76 = sphi 0, %s60
    %s84 = sphi 0, %s86
    %s87 = sphi 0, %s84
    %s88 = sphi 0, %s87
    %s104 = sphi 0, %s88
    %s110 = sphi 0, %s112
    %s113 = sphi 0, %s110
    %s114 = sphi 0, %s113
    %s130 = sphi 0, %s114
  $region4: #{_lambda_.1} parent=0 // loop_header_branch
    %21 = sbr.rel (%p19) target = $region8
  $region5: #{_lambda_.1} parent=0 // loop_body
    %s23 = ssub.s32 %s18, 1
    %s24 = ssub.s32 %s18, 2
    %s25 = sadd.s32 %s18, 1
    %s26 = ssub.s32 %s18, %s25
    %p27 = scmp.eq.s32.totalorder %s26, 0
    %s29 = sadd.s32 %s28, 1
    %s30 = scalar_select %p27, %s28, %s29
    %p33 = pneg %p27
    %p34 = scmp.eq.s32.totalorder %s18, 6
    %p35 = por %p33, %p34
    %p36 = scmp.ne.s32.totalorder %s28, %s31
    %p37 = scmp.eq.s32.totalorder %s18, 0
    %p38 = por %p36, %p37
    %p39 = scmp.ne.s32.totalorder %s28, %s31
    %p40 = scmp.eq.s32.totalorder %s23, 6
    %p41 = por %p39, %p40
    %p42 = scmp.ne.s32.totalorder %s31, %s32
    %p43 = scmp.eq.s32.totalorder %s23, 0
    %p44 = por %p42, %p43
    %p45 = scmp.ne.s32.totalorder %s31, %s32
    %p46 = scmp.eq.s32.totalorder %s24, 6
    %p47 = por %p45, %p46
    %p49 = scmp.ne.s32.totalorder %s32, %s48
    %p50 = scmp.eq.s32.totalorder %s24, 0
    %p51 = por %p49, %p50
    %s52 = sld [smem:[#allocation3 + %s18]]
    %s53 = sld [smem:[#allocation3 + %s25]]
    %s54 = ssub.s32 %s52, %s53
    %p55 = scmp.eq.s32.totalorder %s54, 0
    %s57 = sadd.s32 %s56, 1
    %s58 = scalar_select %p55, %s56, %s57
    %p61 = pneg %p55
    %p62 = scmp.eq.s32.totalorder %s18, 6
    %p63 = por %p61, %p62
    %p64 = scmp.ne.s32.totalorder %s56, %s59
    %p65 = scmp.eq.s32.totalorder %s18, 0
    %p66 = por %p64, %p65
    %p67 = scmp.ne.s32.totalorder %s56, %s59
    %p68 = scmp.eq.s32.totalorder %s23, 6
    %p69 = por %p67, %p68
    %p70 = scmp.ne.s32.totalorder %s59, %s60
    %p71 = scmp.eq.s32.totalorder %s23, 0
    %p72 = por %p70, %p71
    %p73 = scmp.ne.s32.totalorder %s59, %s60
    %p74 = scmp.eq.s32.totalorder %s24, 6
    %p75 = por %p73, %p74
    %p77 = scmp.ne.s32.totalorder %s60, %s76
    %p78 = scmp.eq.s32.totalorder %s24, 0
    %p79 = por %p77, %p78
    %s80 = sld [smem:[#allocation3 + %s18]]
    %s81 = sld [smem:[#allocation3 + %s25]]
    %s82 = ssub.s32 %s80, %s81
    %p83 = scmp.eq.s32.totalorder %s82, 0
    %s85 = sadd.s32 %s84, 1
    %s86 = scalar_select %p83, %s84, %s85
    %p89 = pneg %p83
    %p90 = scmp.eq.s32.totalorder %s18, 6
    %p91 = por %p89, %p90
    %p92 = scmp.ne.s32.totalorder %s84, %s87
    %p93 = scmp.eq.s32.totalorder %s18, 0
    %p94 = por %p92, %p93
    %p95 = scmp.ne.s32.totalorder %s84, %s87
    %p96 = scmp.eq.s32.totalorder %s23, 6
    %p97 = por %p95, %p96
    %p98 = scmp.ne.s32.totalorder %s87, %s88
    %p99 = scmp.eq.s32.totalorder %s23, 0
    %p100 = por %p98, %p99
    %p101 = scmp.ne.s32.totalorder %s87, %s88
    %p102 = scmp.eq.s32.totalorder %s24, 6
    %p103 = por %p101, %p102
    %p105 = scmp.ne.s32.totalorder %s88, %s104
    %p106 = scmp.eq.s32.totalorder %s24, 0
    %p107 = por %p105, %p106
    %s108 = ssub.s32 %s18, %s25
    %p109 = scmp.eq.s32.totalorder %s108, 0
    %s111 = sadd.s32 %s110, 1
    %s112 = scalar_select %p109, %s110, %s111
    %p115 = pneg %p109
    %p116 = scmp.eq.s32.totalorder %s18, 6
    %p117 = por %p115, %p116
    %p118 = scmp.ne.s32.totalorder %s110, %s113
    %p119 = scmp.eq.s32.totalorder %s18, 0
    %p120 = por %p118, %p119
    %p121 = scmp.ne.s32.totalorder %s110, %s113
    %p122 = scmp.eq.s32.totalorder %s23, 6
    %p123 = por %p121, %p122
    %p124 = scmp.ne.s32.totalorder %s113, %s114
    %p125 = scmp.eq.s32.totalorder %s23, 0
    %p126 = por %p124, %p125
    %p127 = scmp.ne.s32.totalorder %s113, %s114
    %p128 = scmp.eq.s32.totalorder %s24, 6
    %p129 = por %p127, %p128
    %p131 = scmp.ne.s32.totalorder %s114, %s130
    %p132 = scmp.eq.s32.totalorder %s24, 0
    %p133 = por %p131, %p132
    %p134 = scmp.le.s32.totalorder 1, %s18
    %p135 = scmp.lt.s32.totalorder %s18, 8
    %p136 = pnand %p134, %p135
    %p137 = pneg %p136
    // Predicated region
    $region9: #{_lambda_.1} parent=5 // pred_check
      _
    $region10: #{_lambda_.1} parent=5 // pred_check_branch
      %139 = sbr.rel (%p136) target = $region12
    $region11: #{_lambda_.1} parent=5 // pred_region
      %s140 = ssub.s32 %s18, 1
    $region12: #{_lambda_.1} parent=5 // pred_fallthru
      _
    %p141 = scmp.lt.s32.totalorder %s18, 7
    // Predicated region
    $region13: #{_lambda_.1} parent=5 // pred_check
      %p142 = pneg %p141
    $region14: #{_lambda_.1} parent=5 // pred_check_branch
      %144 = sbr.rel (%p142) target = $region16
    $region15: #{_lambda_.1} parent=5 // pred_region
      // Predicated region
      $region17: #{_lambda_.1} parent=15 // pred_check
        %p145 = pneg %p38
      $region18: #{_lambda_.1} parent=15 // pred_check_branch
        %147 = sbr.rel (%p145) target = $region20
      $region19: #{_lambda_.1} parent=15 // pred_region
        %s148 = smul.u32 16, %s18
        %p149 = scmp.lt.s32.totalorder %s148, 111
        %s150 = scalar_select %p149, %s148, 111
        %s151 = smul.addr %s150, 2
        %s152 = smul.addr %s151, 4
        %s153 = scalar_lea.vmem %s1, %s152
        %s154 = smul.u32 16, %s18
      $region20: #{_lambda_.1} parent=15 // pred_fallthru
        _
      // Predicated region
      $region21: #{_lambda_.1} parent=15 // pred_check
        %p155 = pneg %p66
      $region22: #{_lambda_.1} parent=15 // pred_check_branch
        %157 = sbr.rel (%p155) target = $region24
      $region23: #{_lambda_.1} parent=15 // pred_region
        %s158 = sld [smem:[#allocation3 + %s18]]
        %p159 = scmp.lt.s32.totalorder %s158, 3
        %s160 = scalar_select %p159, %s158, 3
        %s161 = smul.addr %s160, 32
        %s162 = smul.addr %s161, 4
        %s163 = scalar_lea.vmem %s2, %s162
        %s164 = sld [smem:[#allocation3 + %s18]]
      $region24: #{_lambda_.1} parent=15 // pred_fallthru
        _
      // Predicated region
      $region25: #{_lambda_.1} parent=15 // pred_check
        %p165 = pneg %p94
      $region26: #{_lambda_.1} parent=15 // pred_check_branch
        %167 = sbr.rel (%p165) target = $region28
      $region27: #{_lambda_.1} parent=15 // pred_region
        %s168 = sld [smem:[#allocation3 + %s18]]
        %p169 = scmp.lt.s32.totalorder %s168, 3
        %s170 = scalar_select %p169, %s168, 3
        %s171 = scalar_lea.vmem %s3, %s170
        %s172 = sld [smem:[#allocation3 + %s18]]
      $region28: #{_lambda_.1} parent=15 // pred_fallthru
        _
    $region16: #{_lambda_.1} parent=5 // pred_fallthru
      _
    %p173 = scmp.le.s32.totalorder 1, %s18
    %p174 = scmp.lt.s32.totalorder %s18, 8
    %p175 = pnand %p173, %p174
    %p176 = pneg %p175
    // Predicated region
    $region29: #{_lambda_.1} parent=5 // pred_check
      _
    $region30: #{_lambda_.1} parent=5 // pred_check_branch
      %178 = sbr.rel (%p175) target = $region32
    $region31: #{_lambda_.1} parent=5 // pred_region
      %s179 = ssub.s32 %s18, 1
      %s180 = smul.u32 16, %s23
      %p181 = scmp.lt.s32.totalorder %s180, 111
      %s182 = scalar_select %p181, %s180, 111
      %s183 = smul.addr %s182, 2
      %s184 = smul.addr %s183, 4
      %s185 = scalar_lea.vmem %s1, %s184
      %p186 = pneg %p44
      %p187 = pneg %p41
      %s188 = sld [smem:[#allocation3 + %s23]]
      %p189 = scmp.lt.s32.totalorder %s188, 3
      %s190 = scalar_select %p189, %s188, 3
      %s191 = smul.addr %s190, 32
      %s192 = smul.addr %s191, 4
      %s193 = scalar_lea.vmem %s2, %s192
      %p194 = pneg %p72
      %p195 = pneg %p69
      %s196 = sld [smem:[#allocation3 + %s23]]
      %p197 = scmp.lt.s32.totalorder %s196, 3
      %s198 = scalar_select %p197, %s196, 3
      %s199 = scalar_lea.vmem %s3, %s198
      %p200 = pneg %p100
      %p201 = pneg %p97
      %p202 = pneg %p126
      %p203 = pneg %p123
      %s204 = smul.u32 16, %s23
      %p205 = scmp.lt.s32.totalorder %s204, 111
      %s206 = scalar_select %p205, %s204, 111
      %s207 = smul.addr %s206, 4
      %s208 = scalar_lea.vmem %s4, %s207
      %s209 = smul.u32 16, %s23
      %p210 = scmp.lt.s32.totalorder %s209, 111
      %s211 = scalar_select %p210, %s209, 111
      %s212 = smul.addr %s211, 2
      %s213 = smul.addr %s212, 4
      %s214 = scalar_lea.vmem %s1, %s213
      %s215 = smul.u32 16, %s23
      %s216 = sld [smem:[#allocation3 + %s23]]
      %p217 = scmp.lt.s32.totalorder %s216, 3
      %s218 = scalar_select %p217, %s216, 3
      %s219 = smul.addr %s218, 32
      %s220 = smul.addr %s219, 4
      %s221 = scalar_lea.vmem %s2, %s220
      %s222 = sld [smem:[#allocation3 + %s23]]
      %s223 = sld [smem:[#allocation3 + %s23]]
      %p224 = scmp.lt.s32.totalorder %s223, 3
      %s225 = scalar_select %p224, %s223, 3
      %s226 = scalar_lea.vmem %s3, %s225
      %s227 = sld [smem:[#allocation3 + %s23]]
      %s228 = smul.u32 16, %s23
      %p229 = scmp.lt.s32.totalorder %s228, 111
      %s230 = scalar_select %p229, %s228, 111
      %s231 = smul.addr %s230, 4
      %s232 = scalar_lea.vmem %s4, %s231
      %s233 = smul.u32 16, %s23
      %v234 = vld [vmem:[%s214] sm:$0xff]
      %v235 = vld [vmem:[%s214 + $0x8] sm:$0xff]
      %v236 = vld [vmem:[%s214 + $0x10] sm:$0xff]
      %v237 = vld [vmem:[%s214 + $0x18] sm:$0xff]
      %v238 = vld [vmem:[%s214 + $0x20] sm:$0xff]
      %v239 = vld [vmem:[%s214 + $0x28] sm:$0xff]
      %v240 = vld [vmem:[%s214 + $0x30] sm:$0xff]
      %v241 = vld [vmem:[%s214 + $0x38] sm:$0xff]
      %v242 = vld [vmem:[%s214 + $0x40] sm:$0xff]
      %v243 = vld [vmem:[%s214 + $0x48] sm:$0xff]
      %v244 = vld [vmem:[%s214 + $0x50] sm:$0xff]
      %v245 = vld [vmem:[%s214 + $0x58] sm:$0xff]
      %v246 = vld [vmem:[%s214 + $0x60] sm:$0xff]
      %v247 = vld [vmem:[%s214 + $0x68] sm:$0xff]
      %v248 = vld [vmem:[%s214 + $0x70] sm:$0xff]
      %v249 = vld [vmem:[%s214 + $0x78] sm:$0xff]
      %v250 = vld [vmem:[%s221] sm:$0xf]
      %v251 = vld [vmem:[%s221 + $0x4] sm:$0xf]
      %v252 = vld [vmem:[%s221 + $0x8] sm:$0xf]
      %v253 = vld [vmem:[%s221 + $0xc] sm:$0xf]
      %v254 = vld [vmem:[%s221 + $0x10] sm:$0xf]
      %v255 = vld [vmem:[%s221 + $0x14] sm:$0xf]
      %v256 = vld [vmem:[%s221 + $0x18] sm:$0xf]
      %v257 = vld [vmem:[%s221 + $0x1c] sm:$0xf]
      %v258 = vld [vmem:[%s221 + $0x20] sm:$0xf]
      %v259 = vld [vmem:[%s221 + $0x24] sm:$0xf]
      %v260 = vld [vmem:[%s221 + $0x28] sm:$0xf]
      %v261 = vld [vmem:[%s221 + $0x2c] sm:$0xf]
      %v262 = vld [vmem:[%s221 + $0x30] sm:$0xf]
      %v263 = vld [vmem:[%s221 + $0x34] sm:$0xf]
      %v264 = vld [vmem:[%s221 + $0x38] sm:$0xf]
      %v265 = vld [vmem:[%s221 + $0x3c] sm:$0xf]
      %v266 = vld [vmem:[%s221 + $0x40] sm:$0xf]
      %v267 = vld [vmem:[%s221 + $0x44] sm:$0xf]
      %v268 = vld [vmem:[%s221 + $0x48] sm:$0xf]
      %v269 = vld [vmem:[%s221 + $0x4c] sm:$0xf]
      %v270 = vld [vmem:[%s221 + $0x50] sm:$0xf]
      %v271 = vld [vmem:[%s221 + $0x54] sm:$0xf]
      %v272 = vld [vmem:[%s221 + $0x58] sm:$0xf]
      %v273 = vld [vmem:[%s221 + $0x5c] sm:$0xf]
      %v274 = vld [vmem:[%s221 + $0x60] sm:$0xf]
      %v275 = vld [vmem:[%s221 + $0x64] sm:$0xf]
      %v276 = vld [vmem:[%s221 + $0x68] sm:$0xf]
      %v277 = vld [vmem:[%s221 + $0x6c] sm:$0xf]
      %v278 = vld [vmem:[%s221 + $0x70] sm:$0xf]
      %v279 = vld [vmem:[%s221 + $0x74] sm:$0xf]
      %v280 = vld [vmem:[%s221 + $0x78] sm:$0xf]
      %v281 = vld [vmem:[%s221 + $0x7c] sm:$0xf]
      %v282 = vld [vmem:[%s226] sm:$0x1]
      %v284 = vperm.slane %v282, 0
      %v302 = vunpack.c.l.b16 %v234
      %v303 = vunpack.c.h.b16 %v234
      %v304 = vunpack.c.l.b16 %v235
      %v305 = vunpack.c.h.b16 %v235
      %v306 = vunpack.c.l.b16 %v236
      %v307 = vunpack.c.h.b16 %v236
      %v308 = vunpack.c.l.b16 %v237
      %v309 = vunpack.c.h.b16 %v237
      %v310 = vunpack.c.l.b16 %v238
      %v311 = vunpack.c.h.b16 %v238
      %v312 = vunpack.c.l.b16 %v239
      %v313 = vunpack.c.h.b16 %v239
      %v314 = vunpack.c.l.b16 %v240
      %v315 = vunpack.c.h.b16 %v240
      %v316 = vunpack.c.l.b16 %v241
      %v317 = vunpack.c.h.b16 %v241
      %v318 = vunpack.c.l.b16 %v242
      %v319 = vunpack.c.h.b16 %v242
      %v320 = vunpack.c.l.b16 %v243
      %v321 = vunpack.c.h.b16 %v243
      %v322 = vunpack.c.l.b16 %v244
      %v323 = vunpack.c.h.b16 %v244
      %v324 = vunpack.c.l.b16 %v245
      %v325 = vunpack.c.h.b16 %v245
      %v326 = vunpack.c.l.b16 %v246
      %v327 = vunpack.c.h.b16 %v246
      %v328 = vunpack.c.l.b16 %v247
      %v329 = vunpack.c.h.b16 %v247
      %v330 = vunpack.c.l.b16 %v248
      %v331 = vunpack.c.h.b16 %v248
      %v332 = vunpack.c.l.b16 %v249
      %v333 = vunpack.c.h.b16 %v249
      %v334 = vpack.c.b16 %v304, %v302
      %v335 = vpack.c.b16 %v305, %v303
      %v336 = vpack.c.b16 %v308, %v306
      %v337 = vpack.c.b16 %v309, %v307
      %v338 = vpack.c.b16 %v312, %v310
      %v339 = vpack.c.b16 %v313, %v311
      %v340 = vpack.c.b16 %v316, %v314
      %v341 = vpack.c.b16 %v317, %v315
      %v342 = vpack.c.b16 %v320, %v318
      %v343 = vpack.c.b16 %v321, %v319
      %v344 = vpack.c.b16 %v324, %v322
      %v345 = vpack.c.b16 %v325, %v323
      %v346 = vpack.c.b16 %v328, %v326
      %v347 = vpack.c.b16 %v329, %v327
      %v348 = vpack.c.b16 %v332, %v330
      %v349 = vpack.c.b16 %v333, %v331
      %v398 = vunpack.c.l.b16 %v250
      %v399 = vunpack.c.l.b16 %v251
      %v400 = vunpack.c.l.b16 %v252
      %v401 = vunpack.c.l.b16 %v253
      %v402 = vunpack.c.l.b16 %v254
      %v403 = vunpack.c.l.b16 %v255
      %v404 = vunpack.c.l.b16 %v256
      %v405 = vunpack.c.l.b16 %v257
      %v406 = vunpack.c.l.b16 %v258
      %v407 = vunpack.c.l.b16 %v259
      %v408 = vunpack.c.l.b16 %v260
      %v409 = vunpack.c.l.b16 %v261
      %v410 = vunpack.c.l.b16 %v262
      %v411 = vunpack.c.l.b16 %v263
      %v412 = vunpack.c.l.b16 %v264
      %v413 = vunpack.c.l.b16 %v265
      %v414 = vunpack.c.l.b16 %v266
      %v415 = vunpack.c.l.b16 %v267
      %v416 = vunpack.c.l.b16 %v268
      %v417 = vunpack.c.l.b16 %v269
      %v418 = vunpack.c.l.b16 %v270
      %v419 = vunpack.c.l.b16 %v271
      %v420 = vunpack.c.l.b16 %v272
      %v421 = vunpack.c.l.b16 %v273
      %v422 = vunpack.c.l.b16 %v274
      %v423 = vunpack.c.l.b16 %v275
      %v424 = vunpack.c.l.b16 %v276
      %v425 = vunpack.c.l.b16 %v277
      %v426 = vunpack.c.l.b16 %v278
      %v427 = vunpack.c.l.b16 %v279
      %v428 = vunpack.c.l.b16 %v280
      %v429 = vunpack.c.l.b16 %v281
      %v430 = vpack.c.b16 %v399, %v398
      %v431 = vpack.c.b16 %v401, %v400
      %v432 = vpack.c.b16 %v403, %v402
      %v433 = vpack.c.b16 %v405, %v404
      %v434 = vpack.c.b16 %v407, %v406
      %v435 = vpack.c.b16 %v409, %v408
      %v436 = vpack.c.b16 %v411, %v410
      %v437 = vpack.c.b16 %v413, %v412
      %v438 = vpack.c.b16 %v415, %v414
      %v439 = vpack.c.b16 %v417, %v416
      %v440 = vpack.c.b16 %v419, %v418
      %v441 = vpack.c.b16 %v421, %v420
      %v442 = vpack.c.b16 %v423, %v422
      %v443 = vpack.c.b16 %v425, %v424
      %v444 = vpack.c.b16 %v427, %v426
      %v445 = vpack.c.b16 %v429, %v428
      %462 = vmatpush.bf16.msra.mxu0 %v437
      %463 = vmatpush.bf16.msra.mxu0 %v436
      %464 = vmatpush.bf16.msra.mxu0 %v435
      %465 = vmatpush.bf16.msra.mxu0 %v434
      %466 = vmatpush.bf16.msra.mxu0 %v433
      %467 = vmatpush.bf16.msra.mxu0 %v432
      %468 = vmatpush.bf16.msra.mxu0 %v431
      %469 = vmatpush.bf16.msra.mxu0 %v430
      %470 = vmatmul.bf16.gmra.mxu0 %v334
      %v471 = vpop.f32.mrf.mxu0
      %v472 = vadd.f32 %v284, %v471
      %v473 = vpop.f32.mrf.mxu0
      %v474 = vadd.f32 %v284, %v473
      %475 = vmatmul.bf16.gmra.mxu0 %v336
      %v476 = vpop.f32.mrf.mxu0
      %v477 = vadd.f32 %v284, %v476
      %v478 = vpop.f32.mrf.mxu0
      %v479 = vadd.f32 %v284, %v478
      %480 = vmatmul.bf16.gmra.mxu0 %v338
      %v481 = vpop.f32.mrf.mxu0
      %v482 = vadd.f32 %v284, %v481
      %v483 = vpop.f32.mrf.mxu0
      %v484 = vadd.f32 %v284, %v483
      %485 = vmatmul.bf16.gmra.mxu0 %v340
      %v486 = vpop.f32.mrf.mxu0
      %v487 = vadd.f32 %v284, %v486
      %v488 = vpop.f32.mrf.mxu0
      %v489 = vadd.f32 %v284, %v488
      %490 = vmatmul.bf16.gmra.mxu0 %v342
      %v491 = vpop.f32.mrf.mxu0
      %v492 = vadd.f32 %v284, %v491
      %v493 = vpop.f32.mrf.mxu0
      %v494 = vadd.f32 %v284, %v493
      %495 = vmatmul.bf16.gmra.mxu0 %v344
      %v496 = vpop.f32.mrf.mxu0
      %v497 = vadd.f32 %v284, %v496
      %v498 = vpop.f32.mrf.mxu0
      %v499 = vadd.f32 %v284, %v498
      %500 = vmatmul.bf16.gmra.mxu0 %v346
      %v501 = vpop.f32.mrf.mxu0
      %v502 = vadd.f32 %v284, %v501
      %v503 = vpop.f32.mrf.mxu0
      %v504 = vadd.f32 %v284, %v503
      %505 = vmatmul.bf16.gmra.mxu0 %v348
      %v506 = vpop.f32.mrf.mxu0
      %v507 = vadd.f32 %v284, %v506
      %v508 = vpop.f32.mrf.mxu0
      %v509 = vadd.f32 %v284, %v508
      %510 = vdwg.mxu0
      %511 = vmatpush.bf16.msra.mxu0 %v445
      %512 = vmatpush.bf16.msra.mxu0 %v444
      %513 = vmatpush.bf16.msra.mxu0 %v443
      %514 = vmatpush.bf16.msra.mxu0 %v442
      %515 = vmatpush.bf16.msra.mxu0 %v441
      %516 = vmatpush.bf16.msra.mxu0 %v440
      %517 = vmatpush.bf16.msra.mxu0 %v439
      %518 = vmatpush.bf16.msra.mxu0 %v438
      %519 = vmatmul.bf16.gmra.mxu0 %v335
      %v520 = vpop.f32.mrf.mxu0
      %v521 = vadd.f32 %v472, %v520
      %v522 = vpop.f32.mrf.mxu0
      %v523 = vadd.f32 %v474, %v522
      %524 = vmatmul.bf16.gmra.mxu0 %v337
      %v525 = vpop.f32.mrf.mxu0
      %v526 = vadd.f32 %v477, %v525
      %v527 = vpop.f32.mrf.mxu0
      %v528 = vadd.f32 %v479, %v527
      %529 = vmatmul.bf16.gmra.mxu0 %v339
      %v530 = vpop.f32.mrf.mxu0
      %v531 = vadd.f32 %v482, %v530
      %v532 = vpop.f32.mrf.mxu0
      %v533 = vadd.f32 %v484, %v532
      %534 = vmatmul.bf16.gmra.mxu0 %v341
      %v535 = vpop.f32.mrf.mxu0
      %v536 = vadd.f32 %v487, %v535
      %v537 = vpop.f32.mrf.mxu0
      %v538 = vadd.f32 %v489, %v537
      %539 = vmatmul.bf16.gmra.mxu0 %v343
      %v540 = vpop.f32.mrf.mxu0
      %v541 = vadd.f32 %v492, %v540
      %v542 = vpop.f32.mrf.mxu0
      %v543 = vadd.f32 %v494, %v542
      %544 = vmatmul.bf16.gmra.mxu0 %v345
      %v545 = vpop.f32.mrf.mxu0
      %v546 = vadd.f32 %v497, %v545
      %v547 = vpop.f32.mrf.mxu0
      %v548 = vadd.f32 %v499, %v547
      %549 = vmatmul.bf16.gmra.mxu0 %v347
      %v550 = vpop.f32.mrf.mxu0
      %v551 = vadd.f32 %v502, %v550
      %v552 = vpop.f32.mrf.mxu0
      %v553 = vadd.f32 %v504, %v552
      %554 = vmatmul.bf16.gmra.mxu0 %v349
      %v555 = vpop.f32.mrf.mxu0
      %v556 = vadd.f32 %v507, %v555
      %v557 = vpop.f32.mrf.mxu0
      %v558 = vadd.f32 %v509, %v557
      %559 = vdwg.mxu0
      %v560 = vmax.f32 %v521, 0.0
      %v561 = vmax.f32 %v523, 0.0
      %v562 = vmax.f32 %v526, 0.0
      %v563 = vmax.f32 %v528, 0.0
      %v564 = vmax.f32 %v531, 0.0
      %v565 = vmax.f32 %v533, 0.0
      %v566 = vmax.f32 %v536, 0.0
      %v567 = vmax.f32 %v538, 0.0
      %v568 = vmax.f32 %v541, 0.0
      %v569 = vmax.f32 %v543, 0.0
      %v570 = vmax.f32 %v546, 0.0
      %v571 = vmax.f32 %v548, 0.0
      %v572 = vmax.f32 %v551, 0.0
      %v573 = vmax.f32 %v553, 0.0
      %v574 = vmax.f32 %v556, 0.0
      %v575 = vmax.f32 %v558, 0.0
      %v576 = vpack.c.bf16 %v560, %v560
      %v577 = vpack.c.bf16 %v561, %v561
      %v578 = vpack.c.bf16 %v562, %v562
      %v579 = vpack.c.bf16 %v563, %v563
      %v580 = vpack.c.bf16 %v564, %v564
      %v581 = vpack.c.bf16 %v565, %v565
      %v582 = vpack.c.bf16 %v566, %v566
      %v583 = vpack.c.bf16 %v567, %v567
      %v584 = vpack.c.bf16 %v568, %v568
      %v585 = vpack.c.bf16 %v569, %v569
      %v586 = vpack.c.bf16 %v570, %v570
      %v587 = vpack.c.bf16 %v571, %v571
      %v588 = vpack.c.bf16 %v572, %v572
      %v589 = vpack.c.bf16 %v573, %v573
      %v590 = vpack.c.bf16 %v574, %v574
      %v591 = vpack.c.bf16 %v575, %v575
      %592 = vst [vmem:[%s232] sm:$0xf] %v576
      %593 = vst [vmem:[%s232 + $0x4] sm:$0xf] %v577
      %594 = vst [vmem:[%s232 + $0x8] sm:$0xf] %v578
      %595 = vst [vmem:[%s232 + $0xc] sm:$0xf] %v579
      %596 = vst [vmem:[%s232 + $0x10] sm:$0xf] %v580
      %597 = vst [vmem:[%s232 + $0x14] sm:$0xf] %v581
      %598 = vst [vmem:[%s232 + $0x18] sm:$0xf] %v582
      %599 = vst [vmem:[%s232 + $0x1c] sm:$0xf] %v583
      %600 = vst [vmem:[%s232 + $0x20] sm:$0xf] %v584
      %601 = vst [vmem:[%s232 + $0x24] sm:$0xf] %v585
      %602 = vst [vmem:[%s232 + $0x28] sm:$0xf] %v586
      %603 = vst [vmem:[%s232 + $0x2c] sm:$0xf] %v587
      %604 = vst [vmem:[%s232 + $0x30] sm:$0xf] %v588
      %605 = vst [vmem:[%s232 + $0x34] sm:$0xf] %v589
      %606 = vst [vmem:[%s232 + $0x38] sm:$0xf] %v590
      %607 = vst [vmem:[%s232 + $0x3c] sm:$0xf] %v591
      %s608 = smul.u32 16, %s23
      %p609 = scmp.lt.s32.totalorder %s608, 111
      %s610 = scalar_select %p609, %s608, 111
      %s611 = smul.addr %s610, 4
      %s612 = scalar_lea.vmem %s4, %s611
      // Predicated region
      $region33: #{_lambda_.1} parent=31 // pred_check
        %p613 = pneg %p123
      $region34: #{_lambda_.1} parent=31 // pred_check_branch
        %615 = sbr.rel (%p613) target = $region36
      $region35: #{_lambda_.1} parent=31 // pred_region
        %s616 = smul.u32 16, %s23
      $region36: #{_lambda_.1} parent=31 // pred_fallthru
        _
    $region32: #{_lambda_.1} parent=5 // pred_fallthru
      _
    %p617 = scmp.le.s32.totalorder 2, %s18
    // Predicated region
    $region37: #{_lambda_.1} parent=5 // pred_check
      %p618 = pneg %p617
    $region38: #{_lambda_.1} parent=5 // pred_check_branch
      %620 = sbr.rel (%p618) target = $region40
    $region39: #{_lambda_.1} parent=5 // pred_region
      %s621 = ssub.s32 %s18, 2
      // Predicated region
      $region41: #{_lambda_.1} parent=39 // pred_check
        %p622 = pneg %p129
      $region42: #{_lambda_.1} parent=39 // pred_check_branch
        %624 = sbr.rel (%p622) target = $region44
      $region43: #{_lambda_.1} parent=39 // pred_region
        %s625 = smul.u32 16, %s24
        %p626 = scmp.lt.s32.totalorder %s625, 111
        %s627 = scalar_select %p626, %s625, 111
        %s628 = smul.addr %s627, 4
        %s629 = scalar_lea.vmem %s4, %s628
      $region44: #{_lambda_.1} parent=39 // pred_fallthru
        _
    $region40: #{_lambda_.1} parent=5 // pred_fallthru
      _
  $region6: #{_lambda_.1} parent=0 // loop_footer
    %s22 = sadd.s32 1, %s18
  $region7: #{_lambda_.1} parent=0 // loop_footer_branch
    %17 = sbr.rel target = $region3
  $region8: #{_lambda_.1} parent=0 // loop_exit
    _

</llo_original>
